<compile_context>
chip_gen: v7x
topology: tpu7x:2x2x1
jax: 0.10.0
libtpu: 0.0.40
codegen_flags: <defaults>
</compile_context>

<pallas_src>
import jax
import jax.numpy as jnp
from jax.experimental import pallas as pl
from jax.experimental.pallas import tpu as pltpu

IN_FEATURES = 2
HIDDEN = 50
OUT_FEATURES = 1
LANE = 128       # padded lane width for the hidden features
OUT_LANES = 8    # narrow (but sublane-aligned-friendly) output slab; col 0 used
SUBLANE = 8


def _round_up(n, m):
    return ((n + m - 1) // m) * m


def mlp_kernel(x_ref, w1_ref, b1_ref, w2_ref, b2_ref, w3_ref, b3_ref, o_ref):
    x = x_ref[...]                                         # (TB, 2) float32

    # dense1 (K=2): VPU broadcast-FMA in f32 -- a 2-deep contraction would
    # waste an entire MXU pass on fill/drain latency.
    h1 = (x[:, 0:1] * w1_ref[0:1, :]
          + x[:, 1:2] * w1_ref[1:2, :]
          + b1_ref[...])                                   # (TB, 128) f32
    h1 = jnp.maximum(h1, 0.0)

    # dropout(p=0.4) -> identity in eval mode.

    # dense2 (50x50 zero-padded to 128x128): bf16 MXU inputs, f32 accumulation.
    h2 = jnp.dot(h1.astype(jnp.bfloat16), w2_ref[...],
                 preferred_element_type=jnp.float32)       # (TB, 128) f32
    h2 = jnp.maximum(h2 + b2_ref[...], 0.0)

    # dropout(p=0.4) -> identity in eval mode.

    # output layer (50 -> 1): VPU multiply + lane reduction in f32 against the
    # (1, 128) w3 row; padded lanes of h2/w3 are exactly zero so the sum is
    # exact.  Broadcast the (TB, 1) result across the narrow 8-lane output
    # slab; only column 0 is meaningful (sliced in the wrapper).
    y = jnp.sum(h2 * w3_ref[...], axis=-1, keepdims=True)  # (TB, 1) f32
    o_ref[...] = (y + b3_ref[...]).astype(o_ref.dtype)     # (TB, 8)


def mlp_forward(x, padded_params, *, block_batch=2048):
    """x: (B, 2) float32; padded_params from prepare_params(). Returns (B, 1)."""
    w1, b1, w2, b2, w3, b3 = padded_params
    B = x.shape[0]
    # TB must be a multiple of 8 (sublane rule) regardless of block_batch.
    TB = _round_up(min(block_batch, _round_up(B, SUBLANE)), SUBLANE)
    B_pad = _round_up(B, TB)
    if B_pad != B:
        x = jnp.pad(x, ((0, B_pad - B), (0, 0)))

    out = pl.pallas_call(
        mlp_kernel,
        out_shape=jax.ShapeDtypeStruct((B_pad, OUT_LANES), jnp.float32),
        grid=(B_pad // TB,),
        in_specs=[
            pl.BlockSpec((TB, IN_FEATURES), lambda i: (i, 0)),  # x: batch-tiled
            pl.BlockSpec(w1.shape, lambda i: (0, 0)),           # weights stay
            pl.BlockSpec(b1.shape, lambda i: (0, 0)),           # VMEM-resident
            pl.BlockSpec(w2.shape, lambda i: (0, 0)),           # across the grid
            pl.BlockSpec(b2.shape, lambda i: (0, 0)),
            pl.BlockSpec(w3.shape, lambda i: (0, 0)),
            pl.BlockSpec(b3.shape, lambda i: (0, 0)),
        ],
        out_specs=pl.BlockSpec((TB, OUT_LANES), lambda i: (i, 0)),
        compiler_params=pltpu.CompilerParams(
            dimension_semantics=("parallel",)),
    )(x, w1, b1, w2, b2, w3, b3)
    return out[:B, :OUT_FEATURES]


def init_params(key):
    """PyTorch nn.Linear default init: U(-1/sqrt(fan_in), +1/sqrt(fan_in)).
    Weights stored (in_features, out_features) so the math is x @ W."""
    def linear_init(k, fan_in, fan_out):
        kw, kb = jax.random.split(k)
        bound = 1.0 / jnp.sqrt(fan_in)
        w = jax.random.uniform(kw, (fan_in, fan_out), jnp.float32, -bound, bound)
        b = jax.random.uniform(kb, (1, fan_out), jnp.float32, -bound, bound)
        return w, b

    k1, k2, k3 = jax.random.split(key, 3)
    w1, b1 = linear_init(k1, IN_FEATURES, HIDDEN)
    w2, b2 = linear_init(k2, HIDDEN, HIDDEN)
    w3, b3 = linear_init(k3, HIDDEN, OUT_FEATURES)
    return (w1, b1, w2, b2, w3, b3)


def prepare_params(params):
    """Zero-pad once to aligned tiles; cast the MXU weight (w2) to bf16.
    Zero padding keeps the math exact: padded hidden columns stay identically
    zero through bias+ReLU+matmul, and the padded lanes of w3 are zero so the
    final lane-reduction is exact."""
    w1, b1, w2, b2, w3, b3 = params

    def pad2(a, rows, cols):
        return jnp.pad(a, ((0, rows - a.shape[0]), (0, cols - a.shape[1])))

    w1p = pad2(w1, SUBLANE, LANE)                       # (8, 128) f32; rows 0..1 read
    b1p = pad2(b1, 1, LANE)                             # (1, 128) f32
    w2p = pad2(w2, LANE, LANE).astype(jnp.bfloat16)     # (128, 128) bf16 (MXU)
    b2p = pad2(b2, 1, LANE)                             # (1, 128) f32
    w3p = pad2(w3.T, 1, LANE)                           # (1, 128) f32 row (VPU reduce)
    b3p = jnp.broadcast_to(b3.reshape(1, 1), (1, OUT_LANES)).astype(jnp.float32)
    return (w1p, b1p, w2p, b2p, w3p, b3p)


def reference_forward(x, params):
    """Pure-JAX f32 reference (unpadded params)."""
    w1, b1, w2, b2, w3, b3 = params
    h1 = jnp.maximum(x @ w1 + b1, 0.0)
    h2 = jnp.maximum(h1 @ w2 + b2, 0.0)
    return h2 @ w3 + b3


def reference_forward_bf16(x, params):
    """Pure-JAX reference that mirrors the kernel's bf16 layer-2 matmul."""
    w1, b1, w2, b2, w3, b3 = params
    h1 = jnp.maximum(x @ w1 + b1, 0.0)
    h2 = jnp.dot(h1.astype(jnp.bfloat16), w2.astype(jnp.bfloat16),
                 preferred_element_type=jnp.float32)
    h2 = jnp.maximum(h2 + b2, 0.0)
    return h2 @ w3 + b3


if __name__ == "__main__":
    key = jax.random.PRNGKey(0)
    k_params, k_x = jax.random.split(key)

    params = init_params(k_params)
    padded_params = prepare_params(params)

    # Small demo batch; not a multiple of the tile to exercise padding plus a
    # multi-step grid (B=200, TB=128 -> B_pad=256, grid=(2,)).
    B = 200
    x = jax.random.normal(k_x, (B, IN_FEATURES), jnp.float32)

    y = mlp_forward(x, padded_params, block_batch=128)
    y = jax.block_until_ready(y)
    assert y.shape == (B, OUT_FEATURES), y.shape

    # Tight check against a reference that mirrors the kernel's bf16 matmul.
    y_ref_bf16 = reference_forward_bf16(x, params)
    assert jnp.allclose(y, y_ref_bf16, atol=1e-3, rtol=1e-3), \
        "mismatch vs bf16-matched reference"

    # Looser sanity check against the exact f32 reference.
    y_ref_f32 = reference_forward(x, params)
    assert jnp.allclose(y, y_ref_f32, atol=5e-2, rtol=5e-2), \
        "mismatch vs f32 reference"

    print("KERNEL_OK")
</pallas_src>

<mosaic_0001>
module attributes {stable_mosaic.version = 11 : i64} {
  func.func @mlp_kernel(%arg0: i32, %arg1: memref<128x2xf32, #tpu.memory_space<vmem>>, %arg2: memref<8x128xf32, #tpu.memory_space<vmem>>, %arg3: memref<1x128xf32, #tpu.memory_space<vmem>>, %arg4: memref<128x128xbf16, #tpu.memory_space<vmem>>, %arg5: memref<1x128xf32, #tpu.memory_space<vmem>>, %arg6: memref<1x128xf32, #tpu.memory_space<vmem>>, %arg7: memref<1x8xf32, #tpu.memory_space<vmem>>, %arg8: memref<128x8xf32, #tpu.memory_space<vmem>>) attributes {dimension_semantics = [#tpu.dimension_semantics<parallel>], iteration_bounds = array<i64: 2>, scalar_prefetch = 0 : i64, scratch_operands = 0 : i64, tpu.core_type = #tpu.core_type<tc>, window_params = [{transform_indices = @transform_0, window_bounds = array<i64: 128, 2>}, {pipeline_mode = #tpu.pipeline_mode<synchronous>, transform_indices = @transform_1, window_bounds = array<i64: 8, 128>}, {pipeline_mode = #tpu.pipeline_mode<synchronous>, transform_indices = @transform_2, window_bounds = array<i64: 1, 128>}, {pipeline_mode = #tpu.pipeline_mode<synchronous>, transform_indices = @transform_3, window_bounds = array<i64: 128, 128>}, {pipeline_mode = #tpu.pipeline_mode<synchronous>, transform_indices = @transform_4, window_bounds = array<i64: 1, 128>}, {pipeline_mode = #tpu.pipeline_mode<synchronous>, transform_indices = @transform_5, window_bounds = array<i64: 1, 128>}, {pipeline_mode = #tpu.pipeline_mode<synchronous>, transform_indices = @transform_6, window_bounds = array<i64: 1, 8>}, {transform_indices = @transform_7, window_bounds = array<i64: 128, 8>}]} {
    %c0 = arith.constant 0 : index
    %c0_0 = arith.constant 0 : index
    %0 = vector.load %arg1[%c0, %c0_0] : memref<128x2xf32, #tpu.memory_space<vmem>>, vector<128x2xf32>
    %1 = vector.extract_strided_slice %0 {offsets = [0, 0], sizes = [128, 1], strides = [1, 1]} : vector<128x2xf32> to vector<128x1xf32>
    %c0_1 = arith.constant 0 : index
    %c0_2 = arith.constant 0 : index
    %2 = vector.load %arg2[%c0_1, %c0_2] : memref<8x128xf32, #tpu.memory_space<vmem>>, vector<1x128xf32>
    %3 = vector.broadcast %1 : vector<128x1xf32> to vector<128x128xf32>
    %4 = vector.broadcast %2 : vector<1x128xf32> to vector<128x128xf32>
    %5 = arith.mulf %3, %4 : vector<128x128xf32>
    %6 = vector.extract_strided_slice %0 {offsets = [0, 1], sizes = [128, 1], strides = [1, 1]} : vector<128x2xf32> to vector<128x1xf32>
    %c1 = arith.constant 1 : index
    %c0_3 = arith.constant 0 : index
    %7 = vector.load %arg2[%c1, %c0_3] : memref<8x128xf32, #tpu.memory_space<vmem>>, vector<1x128xf32>
    %8 = vector.broadcast %6 : vector<128x1xf32> to vector<128x128xf32>
    %9 = vector.broadcast %7 : vector<1x128xf32> to vector<128x128xf32>
    %10 = arith.mulf %8, %9 : vector<128x128xf32>
    %11 = arith.addf %5, %10 : vector<128x128xf32>
    %c0_4 = arith.constant 0 : index
    %c0_5 = arith.constant 0 : index
    %12 = vector.load %arg3[%c0_4, %c0_5] : memref<1x128xf32, #tpu.memory_space<vmem>>, vector<1x128xf32>
    %13 = vector.broadcast %12 : vector<1x128xf32> to vector<128x128xf32>
    %14 = arith.addf %11, %13 : vector<128x128xf32>
    %cst = arith.constant 0.000000e+00 : f32
    %15 = vector.broadcast %cst : f32 to vector<128x128xf32>
    %16 = arith.maximumf %14, %15 : vector<128x128xf32>
    %17 = arith.truncf %16 : vector<128x128xf32> to vector<128x128xbf16>
    %c0_6 = arith.constant 0 : index
    %c0_7 = arith.constant 0 : index
    %18 = vector.load %arg4[%c0_6, %c0_7] : memref<128x128xbf16, #tpu.memory_space<vmem>>, vector<128x128xbf16>
    %cst_8 = arith.constant dense<0.000000e+00> : vector<128x128xf32>
    %19 = tpu.matmul %17, %18, %cst_8 {dimension_numbers = #tpu.dot_dimension_numbers<[1], [0], [0], [1], [0, 0, 1, 1], [], []>} : vector<128x128xbf16>, vector<128x128xbf16>, vector<128x128xf32> -> vector<128x128xf32>
    %c0_9 = arith.constant 0 : index
    %c0_10 = arith.constant 0 : index
    %20 = vector.load %arg5[%c0_9, %c0_10] : memref<1x128xf32, #tpu.memory_space<vmem>>, vector<1x128xf32>
    %21 = vector.broadcast %20 : vector<1x128xf32> to vector<128x128xf32>
    %22 = arith.addf %19, %21 : vector<128x128xf32>
    %cst_11 = arith.constant 0.000000e+00 : f32
    %23 = vector.broadcast %cst_11 : f32 to vector<128x128xf32>
    %24 = arith.maximumf %22, %23 : vector<128x128xf32>
    %c0_12 = arith.constant 0 : index
    %c0_13 = arith.constant 0 : index
    %25 = vector.load %arg6[%c0_12, %c0_13] : memref<1x128xf32, #tpu.memory_space<vmem>>, vector<1x128xf32>
    %26 = vector.broadcast %25 : vector<1x128xf32> to vector<128x128xf32>
    %27 = arith.mulf %24, %26 : vector<128x128xf32>
    %cst_14 = arith.constant dense<0.000000e+00> : vector<128xf32>
    %28 = vector.multi_reduction <add>, %27, %cst_14 [1] : vector<128x128xf32> to vector<128xf32>
    %29 = vector.shape_cast %28 : vector<128xf32> to vector<128x1xf32>
    %c0_15 = arith.constant 0 : index
    %c0_16 = arith.constant 0 : index
    %30 = vector.load %arg7[%c0_15, %c0_16] : memref<1x8xf32, #tpu.memory_space<vmem>>, vector<1x8xf32>
    %31 = vector.broadcast %29 : vector<128x1xf32> to vector<128x8xf32>
    %32 = vector.broadcast %30 : vector<1x8xf32> to vector<128x8xf32>
    %33 = arith.addf %31, %32 : vector<128x8xf32>
    %c0_17 = arith.constant 0 : index
    %c0_18 = arith.constant 0 : index
    %34 = vector.load %arg8[%c0_17, %c0_18] : memref<128x8xf32, #tpu.memory_space<vmem>>, vector<128x8xf32>
    tpu.vector_store %arg8[%c0_17, %c0_18], %33 {strides = array<i32>} : memref<128x8xf32, #tpu.memory_space<vmem>>, vector<128x8xf32>,
    return
  }
  func.func @transform_0(%arg0: i32) -> (i32, i32) {
    %c0_i32 = arith.constant 0 : i32
    %c0_i32_0 = arith.constant 0 : i32
    return %arg0, %c0_i32 : i32, i32
  }
  func.func @transform_1(%arg0: i32) -> (i32, i32) {
    %c0_i32 = arith.constant 0 : i32
    %c0_i32_0 = arith.constant 0 : i32
    %c0_i32_1 = arith.constant 0 : i32
    return %c0_i32, %c0_i32_0 : i32, i32
  }
  func.func @transform_2(%arg0: i32) -> (i32, i32) {
    %c0_i32 = arith.constant 0 : i32
    %c0_i32_0 = arith.constant 0 : i32
    %c0_i32_1 = arith.constant 0 : i32
    return %c0_i32, %c0_i32_0 : i32, i32
  }
  func.func @transform_3(%arg0: i32) -> (i32, i32) {
    %c0_i32 = arith.constant 0 : i32
    %c0_i32_0 = arith.constant 0 : i32
    %c0_i32_1 = arith.constant 0 : i32
    return %c0_i32, %c0_i32_0 : i32, i32
  }
  func.func @transform_4(%arg0: i32) -> (i32, i32) {
    %c0_i32 = arith.constant 0 : i32
    %c0_i32_0 = arith.constant 0 : i32
    %c0_i32_1 = arith.constant 0 : i32
    return %c0_i32, %c0_i32_0 : i32, i32
  }
  func.func @transform_5(%arg0: i32) -> (i32, i32) {
    %c0_i32 = arith.constant 0 : i32
    %c0_i32_0 = arith.constant 0 : i32
    %c0_i32_1 = arith.constant 0 : i32
    return %c0_i32, %c0_i32_0 : i32, i32
  }
  func.func @transform_6(%arg0: i32) -> (i32, i32) {
    %c0_i32 = arith.constant 0 : i32
    %c0_i32_0 = arith.constant 0 : i32
    %c0_i32_1 = arith.constant 0 : i32
    return %c0_i32, %c0_i32_0 : i32, i32
  }
  func.func @transform_7(%arg0: i32) -> (i32, i32) {
    %c0_i32 = arith.constant 0 : i32
    %c0_i32_0 = arith.constant 0 : i32
    return %arg0, %c0_i32 : i32, i32
  }
}

</mosaic_0001>

<llo_original>
// kernel: tpu_custom_call.1
$region0: #{tpu_custom_call.1}
  #allocation0 [shape = 'u32[]', space=smem, size = 0x4, offset = 0x4, fixed_abs, tag = 'smem constant byte address 0x4 - core index']
  #allocation1 [shape = 'u32[144,128]{1,0:T(1,128)}', space=vmem, size = 0x12000, scoped, tag = 'internal scratch']
  %s0 = inlined_call_operand.vmem [shape: f32[256,2], index: 0, kind: input, shape index: {}]
  %s1 = inlined_call_operand.vmem [shape: f32[8,128], index: 1, kind: input, shape index: {}]
  %s2 = inlined_call_operand.vmem [shape: f32[1,128], index: 2, kind: input, shape index: {}]
  %s3 = inlined_call_operand.vmem [shape: bf16[128,128], index: 3, kind: input, shape index: {}]
  %s4 = inlined_call_operand.vmem [shape: f32[1,128], index: 4, kind: input, shape index: {}]
  %s5 = inlined_call_operand.vmem [shape: f32[1,128], index: 5, kind: input, shape index: {}]
  %s6 = inlined_call_operand.vmem [shape: f32[1,8], index: 6, kind: input, shape index: {}]
  %s7 = inlined_call_operand.vmem [shape: f32[256,8], index: 7, kind: output, shape index: {}]
  %s8 = sld [smem:[#allocation0]]
  $region61: #{tpu_custom_call.1} parent=0
    _
  %s10 = ssub.s32 1, %s8
  %s11 = scalar_select 0, %s10, %s8
  loop: start=0, step=1, limit=4
  $region2: #{tpu_custom_call.1} parent=0 // loop_pre_header
    _
  $region3: #{tpu_custom_call.1} parent=0 // loop_header
    %s13 = sphi 0, %s17
    %p14 = scmp.ge.s32.totalorder %s13, 4
    %s23 = sphi 0, %s25
    %s26 = sphi 0, %s23
    %s27 = sphi 0, %s26
    %s43 = sphi 0, %s27
    %s47 = sphi 0, %s47
    %s49 = sphi 0, %s47
    %s50 = sphi 0, %s49
    %s64 = sphi 0, %s50
    %s68 = sphi 0, %s68
    %s70 = sphi 0, %s68
    %s71 = sphi 0, %s70
    %s85 = sphi 0, %s71
    %s89 = sphi 0, %s89
    %s91 = sphi 0, %s89
    %s92 = sphi 0, %s91
    %s106 = sphi 0, %s92
    %s110 = sphi 0, %s110
    %s112 = sphi 0, %s110
    %s113 = sphi 0, %s112
    %s127 = sphi 0, %s113
    %s131 = sphi 0, %s131
    %s133 = sphi 0, %s131
    %s134 = sphi 0, %s133
    %s148 = sphi 0, %s134
    %s152 = sphi 0, %s152
    %s154 = sphi 0, %s152
    %s155 = sphi 0, %s154
    %s169 = sphi 0, %s155
    %s175 = sphi 0, %s177
    %s178 = sphi 0, %s175
    %s179 = sphi 0, %s178
    %s195 = sphi 0, %s179
  $region4: #{tpu_custom_call.1} parent=0 // loop_header_branch
    %16 = sbr.rel (%p14) target = $region8
  $region5: #{tpu_custom_call.1} parent=0 // loop_body
    %s18 = ssub.s32 %s13, 1
    %s19 = ssub.s32 %s13, 2
    %s20 = sadd.s32 %s13, 1
    %s21 = ssub.s32 %s13, %s20
    %p22 = scmp.eq.s32.totalorder %s21, 0
    %s24 = sadd.s32 %s23, 1
    %s25 = scalar_select %p22, %s23, %s24
    %p28 = pneg %p22
    %p29 = scmp.eq.s32.totalorder %s13, 1
    %p30 = por %p28, %p29
    %p31 = scmp.ne.s32.totalorder %s23, %s26
    %p32 = scmp.eq.s32.totalorder %s13, 0
    %p33 = por %p31, %p32
    %p34 = scmp.ne.s32.totalorder %s23, %s26
    %p35 = scmp.eq.s32.totalorder %s18, 1
    %p36 = por %p34, %p35
    %p37 = scmp.ne.s32.totalorder %s26, %s27
    %p38 = scmp.eq.s32.totalorder %s18, 0
    %p39 = por %p37, %p38
    %p40 = scmp.ne.s32.totalorder %s26, %s27
    %p41 = scmp.eq.s32.totalorder %s19, 1
    %p42 = por %p40, %p41
    %p44 = scmp.ne.s32.totalorder %s27, %s43
    %p45 = scmp.eq.s32.totalorder %s19, 0
    %p46 = por %p44, %p45
    %s48 = sadd.s32 %s47, 1
    %p51 = scmp.eq.s32.totalorder %s13, 1
    %p52 = scmp.ne.s32.totalorder %s47, %s49
    %p53 = scmp.eq.s32.totalorder %s13, 0
    %p54 = por %p52, %p53
    %p55 = scmp.ne.s32.totalorder %s47, %s49
    %p56 = scmp.eq.s32.totalorder %s18, 1
    %p57 = por %p55, %p56
    %p58 = scmp.ne.s32.totalorder %s49, %s50
    %p59 = scmp.eq.s32.totalorder %s18, 0
    %p60 = por %p58, %p59
    %p61 = scmp.ne.s32.totalorder %s49, %s50
    %p62 = scmp.eq.s32.totalorder %s19, 1
    %p63 = por %p61, %p62
    %p65 = scmp.ne.s32.totalorder %s50, %s64
    %p66 = scmp.eq.s32.totalorder %s19, 0
    %p67 = por %p65, %p66
    %s69 = sadd.s32 %s68, 1
    %p72 = scmp.eq.s32.totalorder %s13, 1
    %p73 = scmp.ne.s32.totalorder %s68, %s70
    %p74 = scmp.eq.s32.totalorder %s13, 0
    %p75 = por %p73, %p74
    %p76 = scmp.ne.s32.totalorder %s68, %s70
    %p77 = scmp.eq.s32.totalorder %s18, 1
    %p78 = por %p76, %p77
    %p79 = scmp.ne.s32.totalorder %s70, %s71
    %p80 = scmp.eq.s32.totalorder %s18, 0
    %p81 = por %p79, %p80
    %p82 = scmp.ne.s32.totalorder %s70, %s71
    %p83 = scmp.eq.s32.totalorder %s19, 1
    %p84 = por %p82, %p83
    %p86 = scmp.ne.s32.totalorder %s71, %s85
    %p87 = scmp.eq.s32.totalorder %s19, 0
    %p88 = por %p86, %p87
    %s90 = sadd.s32 %s89, 1
    %p93 = scmp.eq.s32.totalorder %s13, 1
    %p94 = scmp.ne.s32.totalorder %s89, %s91
    %p95 = scmp.eq.s32.totalorder %s13, 0
    %p96 = por %p94, %p95
    %p97 = scmp.ne.s32.totalorder %s89, %s91
    %p98 = scmp.eq.s32.totalorder %s18, 1
    %p99 = por %p97, %p98
    %p100 = scmp.ne.s32.totalorder %s91, %s92
    %p101 = scmp.eq.s32.totalorder %s18, 0
    %p102 = por %p100, %p101
    %p103 = scmp.ne.s32.totalorder %s91, %s92
    %p104 = scmp.eq.s32.totalorder %s19, 1
    %p105 = por %p103, %p104
    %p107 = scmp.ne.s32.totalorder %s92, %s106
    %p108 = scmp.eq.s32.totalorder %s19, 0
    %p109 = por %p107, %p108
    %s111 = sadd.s32 %s110, 1
    %p114 = scmp.eq.s32.totalorder %s13, 1
    %p115 = scmp.ne.s32.totalorder %s110, %s112
    %p116 = scmp.eq.s32.totalorder %s13, 0
    %p117 = por %p115, %p116
    %p118 = scmp.ne.s32.totalorder %s110, %s112
    %p119 = scmp.eq.s32.totalorder %s18, 1
    %p120 = por %p118, %p119
    %p121 = scmp.ne.s32.totalorder %s112, %s113
    %p122 = scmp.eq.s32.totalorder %s18, 0
    %p123 = por %p121, %p122
    %p124 = scmp.ne.s32.totalorder %s112, %s113
    %p125 = scmp.eq.s32.totalorder %s19, 1
    %p126 = por %p124, %p125
    %p128 = scmp.ne.s32.totalorder %s113, %s127
    %p129 = scmp.eq.s32.totalorder %s19, 0
    %p130 = por %p128, %p129
    %s132 = sadd.s32 %s131, 1
    %p135 = scmp.eq.s32.totalorder %s13, 1
    %p136 = scmp.ne.s32.totalorder %s131, %s133
    %p137 = scmp.eq.s32.totalorder %s13, 0
    %p138 = por %p136, %p137
    %p139 = scmp.ne.s32.totalorder %s131, %s133
    %p140 = scmp.eq.s32.totalorder %s18, 1
    %p141 = por %p139, %p140
    %p142 = scmp.ne.s32.totalorder %s133, %s134
    %p143 = scmp.eq.s32.totalorder %s18, 0
    %p144 = por %p142, %p143
    %p145 = scmp.ne.s32.totalorder %s133, %s134
    %p146 = scmp.eq.s32.totalorder %s19, 1
    %p147 = por %p145, %p146
    %p149 = scmp.ne.s32.totalorder %s134, %s148
    %p150 = scmp.eq.s32.totalorder %s19, 0
    %p151 = por %p149, %p150
    %s153 = sadd.s32 %s152, 1
    %p156 = scmp.eq.s32.totalorder %s13, 1
    %p157 = scmp.ne.s32.totalorder %s152, %s154
    %p158 = scmp.eq.s32.totalorder %s13, 0
    %p159 = por %p157, %p158
    %p160 = scmp.ne.s32.totalorder %s152, %s154
    %p161 = scmp.eq.s32.totalorder %s18, 1
    %p162 = por %p160, %p161
    %p163 = scmp.ne.s32.totalorder %s154, %s155
    %p164 = scmp.eq.s32.totalorder %s18, 0
    %p165 = por %p163, %p164
    %p166 = scmp.ne.s32.totalorder %s154, %s155
    %p167 = scmp.eq.s32.totalorder %s19, 1
    %p168 = por %p166, %p167
    %p170 = scmp.ne.s32.totalorder %s155, %s169
    %p171 = scmp.eq.s32.totalorder %s19, 0
    %p172 = por %p170, %p171
    %s173 = ssub.s32 %s13, %s20
    %p174 = scmp.eq.s32.totalorder %s173, 0
    %s176 = sadd.s32 %s175, 1
    %s177 = scalar_select %p174, %s175, %s176
    %p180 = pneg %p174
    %p181 = scmp.eq.s32.totalorder %s13, 1
    %p182 = por %p180, %p181
    %p183 = scmp.ne.s32.totalorder %s175, %s178
    %p184 = scmp.eq.s32.totalorder %s13, 0
    %p185 = por %p183, %p184
    %p186 = scmp.ne.s32.totalorder %s175, %s178
    %p187 = scmp.eq.s32.totalorder %s18, 1
    %p188 = por %p186, %p187
    %p189 = scmp.ne.s32.totalorder %s178, %s179
    %p190 = scmp.eq.s32.totalorder %s18, 0
    %p191 = por %p189, %p190
    %p192 = scmp.ne.s32.totalorder %s178, %s179
    %p193 = scmp.eq.s32.totalorder %s19, 1
    %p194 = por %p192, %p193
    %p196 = scmp.ne.s32.totalorder %s179, %s195
    %p197 = scmp.eq.s32.totalorder %s19, 0
    %p198 = por %p196, %p197
    %p199 = scmp.le.s32.totalorder 1, %s13
    %p200 = scmp.lt.s32.totalorder %s13, 3
    %p201 = pnand %p199, %p200
    %p202 = pneg %p201
    // Predicated region
    $region9: #{tpu_custom_call.1} parent=5 // pred_check
      _
    $region10: #{tpu_custom_call.1} parent=5 // pred_check_branch
      %204 = sbr.rel (%p201) target = $region12
    $region11: #{tpu_custom_call.1} parent=5 // pred_region
      %s205 = ssub.s32 %s13, 1
      // Predicated region
      $region13: #{tpu_custom_call.1} parent=11 // pred_check
        %p206 = pneg %p60
      $region14: #{tpu_custom_call.1} parent=11 // pred_check_branch
        %208 = sbr.rel (%p206) target = $region16
      $region15: #{tpu_custom_call.1} parent=11 // pred_region
        _
      $region16: #{tpu_custom_call.1} parent=11 // pred_fallthru
        _
      // Predicated region
      $region17: #{tpu_custom_call.1} parent=11 // pred_check
        %p209 = pneg %p81
      $region18: #{tpu_custom_call.1} parent=11 // pred_check_branch
        %211 = sbr.rel (%p209) target = $region20
      $region19: #{tpu_custom_call.1} parent=11 // pred_region
        _
      $region20: #{tpu_custom_call.1} parent=11 // pred_fallthru
        _
      // Predicated region
      $region21: #{tpu_custom_call.1} parent=11 // pred_check
        %p212 = pneg %p102
      $region22: #{tpu_custom_call.1} parent=11 // pred_check_branch
        %214 = sbr.rel (%p212) target = $region24
      $region23: #{tpu_custom_call.1} parent=11 // pred_region
        _
      $region24: #{tpu_custom_call.1} parent=11 // pred_fallthru
        _
      // Predicated region
      $region25: #{tpu_custom_call.1} parent=11 // pred_check
        %p215 = pneg %p123
      $region26: #{tpu_custom_call.1} parent=11 // pred_check_branch
        %217 = sbr.rel (%p215) target = $region28
      $region27: #{tpu_custom_call.1} parent=11 // pred_region
        _
      $region28: #{tpu_custom_call.1} parent=11 // pred_fallthru
        _
      // Predicated region
      $region29: #{tpu_custom_call.1} parent=11 // pred_check
        %p218 = pneg %p144
      $region30: #{tpu_custom_call.1} parent=11 // pred_check_branch
        %220 = sbr.rel (%p218) target = $region32
      $region31: #{tpu_custom_call.1} parent=11 // pred_region
        _
      $region32: #{tpu_custom_call.1} parent=11 // pred_fallthru
        _
      // Predicated region
      $region33: #{tpu_custom_call.1} parent=11 // pred_check
        %p221 = pneg %p165
      $region34: #{tpu_custom_call.1} parent=11 // pred_check_branch
        %223 = sbr.rel (%p221) target = $region36
      $region35: #{tpu_custom_call.1} parent=11 // pred_region
        _
      $region36: #{tpu_custom_call.1} parent=11 // pred_fallthru
        _
    $region12: #{tpu_custom_call.1} parent=5 // pred_fallthru
      _
    %p224 = scmp.lt.s32.totalorder %s13, 2
    // Predicated region
    $region37: #{tpu_custom_call.1} parent=5 // pred_check
      %p225 = pneg %p224
    $region38: #{tpu_custom_call.1} parent=5 // pred_check_branch
      %227 = sbr.rel (%p225) target = $region40
    $region39: #{tpu_custom_call.1} parent=5 // pred_region
      // Predicated region
      $region41: #{tpu_custom_call.1} parent=39 // pred_check
        %p228 = pneg %p33
      $region42: #{tpu_custom_call.1} parent=39 // pred_check_branch
        %230 = sbr.rel (%p228) target = $region44
      $region43: #{tpu_custom_call.1} parent=39 // pred_region
        %s231 = smul.u32 16, %s13
        %p232 = scmp.lt.s32.totalorder %s231, 31
        %s233 = scalar_select %p232, %s231, 31
        %s234 = smul.addr %s233, 8
        %s235 = scalar_lea.vmem %s0, %s234
        %s236 = smul.u32 16, %s13
      $region44: #{tpu_custom_call.1} parent=39 // pred_fallthru
        _
    $region40: #{tpu_custom_call.1} parent=5 // pred_fallthru
      _
    %p237 = scmp.le.s32.totalorder 1, %s13
    %p238 = scmp.lt.s32.totalorder %s13, 3
    %p239 = pnand %p237, %p238
    %p240 = pneg %p239
    // Predicated region
    $region45: #{tpu_custom_call.1} parent=5 // pred_check
      _
    $region46: #{tpu_custom_call.1} parent=5 // pred_check_branch
      %242 = sbr.rel (%p239) target = $region48
    $region47: #{tpu_custom_call.1} parent=5 // pred_region
      %s243 = ssub.s32 %s13, 1
      %s244 = smul.u32 16, %s18
      %p245 = scmp.lt.s32.totalorder %s244, 31
      %s246 = scalar_select %p245, %s244, 31
      %s247 = smul.addr %s246, 8
      %s248 = scalar_lea.vmem %s0, %s247
      %p249 = pneg %p39
      %p250 = pneg %p36
      %p251 = pneg %p60
      %p252 = pneg %p57
      %p253 = pneg %p81
      %p254 = pneg %p78
      %p255 = pneg %p102
      %p256 = pneg %p99
      %p257 = pneg %p123
      %p258 = pneg %p120
      %p259 = pneg %p144
      %p260 = pneg %p141
      %p261 = pneg %p165
      %p262 = pneg %p162
      %p263 = pneg %p191
      %p264 = pneg %p188
      %s265 = smul.u32 16, %s18
      %p266 = scmp.lt.s32.totalorder %s265, 31
      %s267 = scalar_select %p266, %s265, 31
      %s268 = smul.addr %s267, 8
      %s269 = scalar_lea.vmem %s7, %s268
      %s270 = smul.u32 16, %s18
      %p271 = scmp.lt.s32.totalorder %s270, 31
      %s272 = scalar_select %p271, %s270, 31
      %s273 = smul.addr %s272, 8
      %s274 = scalar_lea.vmem %s0, %s273
      %s275 = smul.u32 16, %s18
      %s276 = smul.u32 16, %s18
      %p277 = scmp.lt.s32.totalorder %s276, 31
      %s278 = scalar_select %p277, %s276, 31
      %s279 = smul.addr %s278, 8
      %s280 = scalar_lea.vmem %s7, %s279
      %s281 = smul.u32 16, %s18
      %v283 = vld [vmem:[%s274] sm:$0xff]
      %v284 = vld [vmem:[%s274 + $0x8] sm:$0xff]
      %v285 = vld [vmem:[%s274 + $0x10] sm:$0xff]
      %v286 = vld [vmem:[%s274 + $0x18] sm:$0xff]
      %v287 = vld [vmem:[%s274 + $0x20] sm:$0xff]
      %v288 = vld [vmem:[%s274 + $0x28] sm:$0xff]
      %v289 = vld [vmem:[%s274 + $0x30] sm:$0xff]
      %v290 = vld [vmem:[%s274 + $0x38] sm:$0xff]
      %v291 = vld [vmem:[%s274 + $0x40] sm:$0xff]
      %v292 = vld [vmem:[%s274 + $0x48] sm:$0xff]
      %v293 = vld [vmem:[%s274 + $0x50] sm:$0xff]
      %v294 = vld [vmem:[%s274 + $0x58] sm:$0xff]
      %v295 = vld [vmem:[%s274 + $0x60] sm:$0xff]
      %v296 = vld [vmem:[%s274 + $0x68] sm:$0xff]
      %v297 = vld [vmem:[%s274 + $0x70] sm:$0xff]
      %v298 = vld [vmem:[%s274 + $0x78] sm:$0xff]
      %v299 = vld [vmem:[%s1] sm:$0x1]
      %301 = vset.pattern.permute.xlu0 0
      %302 = vperm.xlu0 %301, %v283
      %v303 = vpop.permute.xlu0 %302
      %306 = vset.pattern.permute.xlu0 0
      %307 = vperm.xlu0 %306, %v284
      %v308 = vpop.permute.xlu0 %307
      %311 = vset.pattern.permute.xlu0 0
      %312 = vperm.xlu0 %311, %v285
      %v313 = vpop.permute.xlu0 %312
      %316 = vset.pattern.permute.xlu0 0
      %317 = vperm.xlu0 %316, %v286
      %v318 = vpop.permute.xlu0 %317
      %321 = vset.pattern.permute.xlu0 0
      %322 = vperm.xlu0 %321, %v287
      %v323 = vpop.permute.xlu0 %322
      %326 = vset.pattern.permute.xlu0 0
      %327 = vperm.xlu0 %326, %v288
      %v328 = vpop.permute.xlu0 %327
      %331 = vset.pattern.permute.xlu0 0
      %332 = vperm.xlu0 %331, %v289
      %v333 = vpop.permute.xlu0 %332
      %336 = vset.pattern.permute.xlu0 0
      %337 = vperm.xlu0 %336, %v290
      %v338 = vpop.permute.xlu0 %337
      %341 = vset.pattern.permute.xlu0 0
      %342 = vperm.xlu0 %341, %v291
      %v343 = vpop.permute.xlu0 %342
      %346 = vset.pattern.permute.xlu0 0
      %347 = vperm.xlu0 %346, %v292
      %v348 = vpop.permute.xlu0 %347
      %351 = vset.pattern.permute.xlu0 0
      %352 = vperm.xlu0 %351, %v293
      %v353 = vpop.permute.xlu0 %352
      %356 = vset.pattern.permute.xlu0 0
      %357 = vperm.xlu0 %356, %v294
      %v358 = vpop.permute.xlu0 %357
      %361 = vset.pattern.permute.xlu0 0
      %362 = vperm.xlu0 %361, %v295
      %v363 = vpop.permute.xlu0 %362
      %366 = vset.pattern.permute.xlu0 0
      %367 = vperm.xlu0 %366, %v296
      %v368 = vpop.permute.xlu0 %367
      %371 = vset.pattern.permute.xlu0 0
      %372 = vperm.xlu0 %371, %v297
      %v373 = vpop.permute.xlu0 %372
      %376 = vset.pattern.permute.xlu0 0
      %377 = vperm.xlu0 %376, %v298
      %v378 = vpop.permute.xlu0 %377
      %v380 = vlaneseq
      %v381 = vshrl.u32 %v380, 7
      %v382 = vsub.s32 0, %v381
      %v383 = vrot.slane %v299, %v382
      %v384 = vmul.f32 %v303, %v383
      %v385 = vmul.f32 %v308, %v383
      %v386 = vmul.f32 %v313, %v383
      %v387 = vmul.f32 %v318, %v383
      %v388 = vmul.f32 %v323, %v383
      %v389 = vmul.f32 %v328, %v383
      %v390 = vmul.f32 %v333, %v383
      %v391 = vmul.f32 %v338, %v383
      %v392 = vmul.f32 %v343, %v383
      %v393 = vmul.f32 %v348, %v383
      %v394 = vmul.f32 %v353, %v383
      %v395 = vmul.f32 %v358, %v383
      %v396 = vmul.f32 %v363, %v383
      %v397 = vmul.f32 %v368, %v383
      %v398 = vmul.f32 %v373, %v383
      %v399 = vmul.f32 %v378, %v383
      %v400 = vld [vmem:[%s1 + $0x1] sm:$0x1]
      %401 = vset.pattern.permute.xlu0 1
      %402 = vperm.xlu0 %401, %v283
      %v403 = vpop.permute.xlu0 %402
      %405 = vset.pattern.permute.xlu0 1
      %406 = vperm.xlu0 %405, %v284
      %v407 = vpop.permute.xlu0 %406
      %409 = vset.pattern.permute.xlu0 1
      %410 = vperm.xlu0 %409, %v285
      %v411 = vpop.permute.xlu0 %410
      %413 = vset.pattern.permute.xlu0 1
      %414 = vperm.xlu0 %413, %v286
      %v415 = vpop.permute.xlu0 %414
      %417 = vset.pattern.permute.xlu0 1
      %418 = vperm.xlu0 %417, %v287
      %v419 = vpop.permute.xlu0 %418
      %421 = vset.pattern.permute.xlu0 1
      %422 = vperm.xlu0 %421, %v288
      %v423 = vpop.permute.xlu0 %422
      %425 = vset.pattern.permute.xlu0 1
      %426 = vperm.xlu0 %425, %v289
      %v427 = vpop.permute.xlu0 %426
      %429 = vset.pattern.permute.xlu0 1
      %430 = vperm.xlu0 %429, %v290
      %v431 = vpop.permute.xlu0 %430
      %433 = vset.pattern.permute.xlu0 1
      %434 = vperm.xlu0 %433, %v291
      %v435 = vpop.permute.xlu0 %434
      %437 = vset.pattern.permute.xlu0 1
      %438 = vperm.xlu0 %437, %v292
      %v439 = vpop.permute.xlu0 %438
      %441 = vset.pattern.permute.xlu0 1
      %442 = vperm.xlu0 %441, %v293
      %v443 = vpop.permute.xlu0 %442
      %445 = vset.pattern.permute.xlu0 1
      %446 = vperm.xlu0 %445, %v294
      %v447 = vpop.permute.xlu0 %446
      %449 = vset.pattern.permute.xlu0 1
      %450 = vperm.xlu0 %449, %v295
      %v451 = vpop.permute.xlu0 %450
      %453 = vset.pattern.permute.xlu0 1
      %454 = vperm.xlu0 %453, %v296
      %v455 = vpop.permute.xlu0 %454
      %457 = vset.pattern.permute.xlu0 1
      %458 = vperm.xlu0 %457, %v297
      %v459 = vpop.permute.xlu0 %458
      %461 = vset.pattern.permute.xlu0 1
      %462 = vperm.xlu0 %461, %v298
      %v463 = vpop.permute.xlu0 %462
      %v465 = vlaneseq
      %v466 = vshrl.u32 %v465, 7
      %v467 = vsub.s32 0, %v466
      %v468 = vrot.slane %v400, %v467
      %v469 = vmul.f32 %v403, %v468
      %v470 = vmul.f32 %v407, %v468
      %v471 = vmul.f32 %v411, %v468
      %v472 = vmul.f32 %v415, %v468
      %v473 = vmul.f32 %v419, %v468
      %v474 = vmul.f32 %v423, %v468
      %v475 = vmul.f32 %v427, %v468
      %v476 = vmul.f32 %v431, %v468
      %v477 = vmul.f32 %v435, %v468
      %v478 = vmul.f32 %v439, %v468
      %v479 = vmul.f32 %v443, %v468
      %v480 = vmul.f32 %v447, %v468
      %v481 = vmul.f32 %v451, %v468
      %v482 = vmul.f32 %v455, %v468
      %v483 = vmul.f32 %v459, %v468
      %v484 = vmul.f32 %v463, %v468
      %v485 = vadd.f32 %v384, %v469
      %v486 = vadd.f32 %v385, %v470
      %v487 = vadd.f32 %v386, %v471
      %v488 = vadd.f32 %v387, %v472
      %v489 = vadd.f32 %v388, %v473
      %v490 = vadd.f32 %v389, %v474
      %v491 = vadd.f32 %v390, %v475
      %v492 = vadd.f32 %v391, %v476
      %v493 = vadd.f32 %v392, %v477
      %v494 = vadd.f32 %v393, %v478
      %v495 = vadd.f32 %v394, %v479
      %v496 = vadd.f32 %v395, %v480
      %v497 = vadd.f32 %v396, %v481
      %v498 = vadd.f32 %v397, %v482
      %v499 = vadd.f32 %v398, %v483
      %v500 = vadd.f32 %v399, %v484
      %v501 = vld [vmem:[%s2] sm:$0x1]
      %v503 = vlaneseq
      %v504 = vshrl.u32 %v503, 7
      %v505 = vsub.s32 0, %v504
      %v506 = vrot.slane %v501, %v505
      %v508 = vadd.f32 %v485, %v506
      %v509 = vadd.f32 %v486, %v506
      %v510 = vadd.f32 %v487, %v506
      %v511 = vadd.f32 %v488, %v506
      %v512 = vadd.f32 %v489, %v506
      %v513 = vadd.f32 %v490, %v506
      %v514 = vadd.f32 %v491, %v506
      %v515 = vadd.f32 %v492, %v506
      %v516 = vadd.f32 %v493, %v506
      %v517 = vadd.f32 %v494, %v506
      %v518 = vadd.f32 %v495, %v506
      %v519 = vadd.f32 %v496, %v506
      %v520 = vadd.f32 %v497, %v506
      %v521 = vadd.f32 %v498, %v506
      %v522 = vadd.f32 %v499, %v506
      %v523 = vadd.f32 %v500, %v506
      %v524 = vmax.f32 %v508, 0.0
      %v525 = vmax.f32 %v509, 0.0
      %v526 = vmax.f32 %v510, 0.0
      %v527 = vmax.f32 %v511, 0.0
      %v528 = vmax.f32 %v512, 0.0
      %v529 = vmax.f32 %v513, 0.0
      %v530 = vmax.f32 %v514, 0.0
      %v531 = vmax.f32 %v515, 0.0
      %v532 = vmax.f32 %v516, 0.0
      %v533 = vmax.f32 %v517, 0.0
      %v534 = vmax.f32 %v518, 0.0
      %v535 = vmax.f32 %v519, 0.0
      %v536 = vmax.f32 %v520, 0.0
      %v537 = vmax.f32 %v521, 0.0
      %v538 = vmax.f32 %v522, 0.0
      %v539 = vmax.f32 %v523, 0.0
      %v540 = vpack.c.bf16 %v525, %v524
      %v541 = vpack.c.bf16 %v527, %v526
      %v542 = vpack.c.bf16 %v529, %v528
      %v543 = vpack.c.bf16 %v531, %v530
      %v544 = vpack.c.bf16 %v533, %v532
      %v545 = vpack.c.bf16 %v535, %v534
      %v546 = vpack.c.bf16 %v537, %v536
      %v547 = vpack.c.bf16 %v539, %v538
      %v548 = vld [vmem:[%s3] sm:$0xf]
      %v549 = vld [vmem:[%s3 + $0x4] sm:$0xf]
      %v550 = vld [vmem:[%s3 + $0x8] sm:$0xf]
      %v551 = vld [vmem:[%s3 + $0xc] sm:$0xf]
      %v552 = vld [vmem:[%s3 + $0x10] sm:$0xf]
      %v553 = vld [vmem:[%s3 + $0x14] sm:$0xf]
      %v554 = vld [vmem:[%s3 + $0x18] sm:$0xf]
      %v555 = vld [vmem:[%s3 + $0x1c] sm:$0xf]
      %v556 = vld [vmem:[%s3 + $0x20] sm:$0xf]
      %v557 = vld [vmem:[%s3 + $0x24] sm:$0xf]
      %v558 = vld [vmem:[%s3 + $0x28] sm:$0xf]
      %v559 = vld [vmem:[%s3 + $0x2c] sm:$0xf]
      %v560 = vld [vmem:[%s3 + $0x30] sm:$0xf]
      %v561 = vld [vmem:[%s3 + $0x34] sm:$0xf]
      %v562 = vld [vmem:[%s3 + $0x38] sm:$0xf]
      %v563 = vld [vmem:[%s3 + $0x3c] sm:$0xf]
      %v564 = vld [vmem:[%s4] sm:$0x1]
      %v566 = vlaneseq
      %v567 = vshrl.u32 %v566, 7
      %v568 = vsub.s32 0, %v567
      %v569 = vrot.slane %v564, %v568
      %v587 = vunpack.c.l.b16 %v548
      %v588 = vunpack.c.l.b16 %v549
      %v589 = vunpack.c.l.b16 %v550
      %v590 = vunpack.c.l.b16 %v551
      %v591 = vunpack.c.l.b16 %v552
      %v592 = vunpack.c.l.b16 %v553
      %v593 = vunpack.c.l.b16 %v554
      %v594 = vunpack.c.l.b16 %v555
      %v595 = vunpack.c.l.b16 %v556
      %v596 = vunpack.c.l.b16 %v557
      %v597 = vunpack.c.l.b16 %v558
      %v598 = vunpack.c.l.b16 %v559
      %v599 = vunpack.c.l.b16 %v560
      %v600 = vunpack.c.l.b16 %v561
      %v601 = vunpack.c.l.b16 %v562
      %v602 = vunpack.c.l.b16 %v563
      %v603 = vpack.c.b16 %v588, %v587
      %v604 = vpack.c.b16 %v590, %v589
      %v605 = vpack.c.b16 %v592, %v591
      %v606 = vpack.c.b16 %v594, %v593
      %v607 = vpack.c.b16 %v596, %v595
      %v608 = vpack.c.b16 %v598, %v597
      %v609 = vpack.c.b16 %v600, %v599
      %v610 = vpack.c.b16 %v602, %v601
      %619 = vmatprep.subr.bf16.mxu0 0
      %620 = vmatpush1.bf16.msra.mxu0 %v603
      %621 = vmatprep.subr.bf16.mxu0 0
      %622 = vmatpush1.bf16.msra.mxu0 %v604
      %623 = vmatprep.subr.bf16.mxu0 0
      %624 = vmatpush1.bf16.msra.mxu0 %v605
      %625 = vmatprep.subr.bf16.mxu0 0
      %626 = vmatpush1.bf16.msra.mxu0 %v606
      %627 = vmatprep.subr.bf16.mxu0 0
      %628 = vmatpush1.bf16.msra.mxu0 %v607
      %629 = vmatprep.subr.bf16.mxu0 0
      %630 = vmatpush1.bf16.msra.mxu0 %v608
      %631 = vmatprep.subr.bf16.mxu0 0
      %632 = vmatpush1.bf16.msra.mxu0 %v609
      %633 = vmatprep.subr.bf16.mxu0 0
      %634 = vmatpush1.bf16.msra.mxu0 %v610
      %635 = vmatprep.subr.bf16.mxu0 0
      %636 = vmatpush1.bf16.msra.mxu0 0
      %637 = vmatprep.subr.bf16.mxu0 0
      %638 = vmatpush1.bf16.msra.mxu0 0
      %639 = vmatprep.subr.bf16.mxu0 0
      %640 = vmatpush1.bf16.msra.mxu0 0
      %641 = vmatprep.subr.bf16.mxu0 0
      %642 = vmatpush1.bf16.msra.mxu0 0
      %643 = vmatprep.subr.bf16.mxu0 0
      %644 = vmatpush1.bf16.msra.mxu0 0
      %645 = vmatprep.subr.bf16.mxu0 0
      %646 = vmatpush1.bf16.msra.mxu0 0
      %647 = vmatprep.subr.bf16.mxu0 0
      %648 = vmatpush1.bf16.msra.mxu0 0
      %649 = vmatprep.subr.bf16.mxu0 0
      %650 = vmatpush1.bf16.msra.mxu0 0
      %651 = vmatprep.mubr.bf16.mxu0 0
      %652 = vmatmul.mubr.bf16.gmra.mrb[0].mxu0 %v540
      %v653 = vpop.f32.mrb[0].mxu0
      %v654 = vadd.f32 %v569, %v653
      %v655 = vpop.f32.mrb[0].mxu0
      %v656 = vpop.f32.mrb[0].mxu0
      %v657 = vadd.f32 %v569, %v656
      %v658 = vpop.f32.mrb[0].mxu0
      %659 = vmatprep.mubr.bf16.mxu0 0
      %660 = vmatmul.mubr.bf16.gmra.mrb[0].mxu0 %v541
      %v661 = vpop.f32.mrb[0].mxu0
      %v662 = vadd.f32 %v569, %v661
      %v663 = vpop.f32.mrb[0].mxu0
      %v664 = vpop.f32.mrb[0].mxu0
      %v665 = vadd.f32 %v569, %v664
      %v666 = vpop.f32.mrb[0].mxu0
      %667 = vmatprep.mubr.bf16.mxu0 0
      %668 = vmatmul.mubr.bf16.gmra.mrb[0].mxu0 %v542
      %v669 = vpop.f32.mrb[0].mxu0
      %v670 = vadd.f32 %v569, %v669
      %v671 = vpop.f32.mrb[0].mxu0
      %v672 = vpop.f32.mrb[0].mxu0
      %v673 = vadd.f32 %v569, %v672
      %v674 = vpop.f32.mrb[0].mxu0
      %675 = vmatprep.mubr.bf16.mxu0 0
      %676 = vmatmul.mubr.bf16.gmra.mrb[0].mxu0 %v543
      %v677 = vpop.f32.mrb[0].mxu0
      %v678 = vadd.f32 %v569, %v677
      %v679 = vpop.f32.mrb[0].mxu0
      %v680 = vpop.f32.mrb[0].mxu0
      %v681 = vadd.f32 %v569, %v680
      %v682 = vpop.f32.mrb[0].mxu0
      %683 = vmatprep.mubr.bf16.mxu0 0
      %684 = vmatmul.mubr.bf16.gmra.mrb[0].mxu0 %v544
      %v685 = vpop.f32.mrb[0].mxu0
      %v686 = vadd.f32 %v569, %v685
      %v687 = vpop.f32.mrb[0].mxu0
      %v688 = vpop.f32.mrb[0].mxu0
      %v689 = vadd.f32 %v569, %v688
      %v690 = vpop.f32.mrb[0].mxu0
      %691 = vmatprep.mubr.bf16.mxu0 0
      %692 = vmatmul.mubr.bf16.gmra.mrb[0].mxu0 %v545
      %v693 = vpop.f32.mrb[0].mxu0
      %v694 = vadd.f32 %v569, %v693
      %v695 = vpop.f32.mrb[0].mxu0
      %v696 = vpop.f32.mrb[0].mxu0
      %v697 = vadd.f32 %v569, %v696
      %v698 = vpop.f32.mrb[0].mxu0
      %699 = vmatprep.mubr.bf16.mxu0 0
      %700 = vmatmul.mubr.bf16.gmra.mrb[0].mxu0 %v546
      %v701 = vpop.f32.mrb[0].mxu0
      %v702 = vadd.f32 %v569, %v701
      %v703 = vpop.f32.mrb[0].mxu0
      %v704 = vpop.f32.mrb[0].mxu0
      %v705 = vadd.f32 %v569, %v704
      %v706 = vpop.f32.mrb[0].mxu0
      %707 = vmatprep.mubr.bf16.mxu0 0
      %708 = vmatmul.mubr.bf16.gmra.mrb[0].mxu0 %v547
      %v709 = vpop.f32.mrb[0].mxu0
      %v710 = vadd.f32 %v569, %v709
      %v711 = vpop.f32.mrb[0].mxu0
      %v712 = vpop.f32.mrb[0].mxu0
      %v713 = vadd.f32 %v569, %v712
      %v714 = vpop.f32.mrb[0].mxu0
      %715 = vdwg.mxu0
      %v716 = vmax.f32 %v654, 0.0
      %v717 = vmax.f32 %v657, 0.0
      %v718 = vmax.f32 %v662, 0.0
      %v719 = vmax.f32 %v665, 0.0
      %v720 = vmax.f32 %v670, 0.0
      %v721 = vmax.f32 %v673, 0.0
      %v722 = vmax.f32 %v678, 0.0
      %v723 = vmax.f32 %v681, 0.0
      %v724 = vmax.f32 %v686, 0.0
      %v725 = vmax.f32 %v689, 0.0
      %v726 = vmax.f32 %v694, 0.0
      %v727 = vmax.f32 %v697, 0.0
      %v728 = vmax.f32 %v702, 0.0
      %v729 = vmax.f32 %v705, 0.0
      %v730 = vmax.f32 %v710, 0.0
      %v731 = vmax.f32 %v713, 0.0
      %v732 = vld [vmem:[%s5] sm:$0x1]
      %v734 = vlaneseq
      %v735 = vshrl.u32 %v734, 7
      %v736 = vsub.s32 0, %v735
      %v737 = vrot.slane %v732, %v736
      %v739 = vmul.f32 %v716, %v737
      %v740 = vmul.f32 %v717, %v737
      %v741 = vmul.f32 %v718, %v737
      %v742 = vmul.f32 %v719, %v737
      %v743 = vmul.f32 %v720, %v737
      %v744 = vmul.f32 %v721, %v737
      %v745 = vmul.f32 %v722, %v737
      %v746 = vmul.f32 %v723, %v737
      %v747 = vmul.f32 %v724, %v737
      %v748 = vmul.f32 %v725, %v737
      %v749 = vmul.f32 %v726, %v737
      %v750 = vmul.f32 %v727, %v737
      %v751 = vmul.f32 %v728, %v737
      %v752 = vmul.f32 %v729, %v737
      %v753 = vmul.f32 %v730, %v737
      %v754 = vmul.f32 %v731, %v737
      %755 = vadd.xlane.f32.xlu0 %v739
      %v756 = vpop.xlane.xlu0 %755
      %757 = vadd.xlane.f32.xlu0 %v740
      %v758 = vpop.xlane.xlu0 %757
      %759 = vadd.xlane.f32.xlu0 %v741
      %v760 = vpop.xlane.xlu0 %759
      %761 = vadd.xlane.f32.xlu0 %v742
      %v762 = vpop.xlane.xlu0 %761
      %763 = vadd.xlane.f32.xlu0 %v743
      %v764 = vpop.xlane.xlu0 %763
      %765 = vadd.xlane.f32.xlu0 %v744
      %v766 = vpop.xlane.xlu0 %765
      %767 = vadd.xlane.f32.xlu0 %v745
      %v768 = vpop.xlane.xlu0 %767
      %769 = vadd.xlane.f32.xlu0 %v746
      %v770 = vpop.xlane.xlu0 %769
      %771 = vadd.xlane.f32.xlu0 %v747
      %v772 = vpop.xlane.xlu0 %771
      %773 = vadd.xlane.f32.xlu0 %v748
      %v774 = vpop.xlane.xlu0 %773
      %775 = vadd.xlane.f32.xlu0 %v749
      %v776 = vpop.xlane.xlu0 %775
      %777 = vadd.xlane.f32.xlu0 %v750
      %v778 = vpop.xlane.xlu0 %777
      %779 = vadd.xlane.f32.xlu0 %v751
      %v780 = vpop.xlane.xlu0 %779
      %781 = vadd.xlane.f32.xlu0 %v752
      %v782 = vpop.xlane.xlu0 %781
      %783 = vadd.xlane.f32.xlu0 %v753
      %v784 = vpop.xlane.xlu0 %783
      %785 = vadd.xlane.f32.xlu0 %v754
      %v786 = vpop.xlane.xlu0 %785
      %v787 = vld [vmem:[%s6] sm:$0x1]
      %v789 = vlaneseq
      %v790 = vshrl.u32 %v789, 7
      %v791 = vsub.s32 0, %v790
      %v792 = vrot.slane %v787, %v791
      %v794 = vadd.f32 %v756, %v792
      %v795 = vadd.f32 %v758, %v792
      %v796 = vadd.f32 %v760, %v792
      %v797 = vadd.f32 %v762, %v792
      %v798 = vadd.f32 %v764, %v792
      %v799 = vadd.f32 %v766, %v792
      %v800 = vadd.f32 %v768, %v792
      %v801 = vadd.f32 %v770, %v792
      %v802 = vadd.f32 %v772, %v792
      %v803 = vadd.f32 %v774, %v792
      %v804 = vadd.f32 %v776, %v792
      %v805 = vadd.f32 %v778, %v792
      %v806 = vadd.f32 %v780, %v792
      %v807 = vadd.f32 %v782, %v792
      %v808 = vadd.f32 %v784, %v792
      %v809 = vadd.f32 %v786, %v792
      %vm810 = vcmask 64512
      %811 = vst.msk [vmem:[%s280] sm:$0xff] %vm810, %v794
      %812 = vst.msk [vmem:[%s280 + $0x8] sm:$0xff] %vm810, %v795
      %813 = vst.msk [vmem:[%s280 + $0x10] sm:$0xff] %vm810, %v796
      %814 = vst.msk [vmem:[%s280 + $0x18] sm:$0xff] %vm810, %v797
      %815 = vst.msk [vmem:[%s280 + $0x20] sm:$0xff] %vm810, %v798
      %816 = vst.msk [vmem:[%s280 + $0x28] sm:$0xff] %vm810, %v799
      %817 = vst.msk [vmem:[%s280 + $0x30] sm:$0xff] %vm810, %v800
      %818 = vst.msk [vmem:[%s280 + $0x38] sm:$0xff] %vm810, %v801
      %819 = vst.msk [vmem:[%s280 + $0x40] sm:$0xff] %vm810, %v802
      %820 = vst.msk [vmem:[%s280 + $0x48] sm:$0xff] %vm810, %v803
      %821 = vst.msk [vmem:[%s280 + $0x50] sm:$0xff] %vm810, %v804
      %822 = vst.msk [vmem:[%s280 + $0x58] sm:$0xff] %vm810, %v805
      %823 = vst.msk [vmem:[%s280 + $0x60] sm:$0xff] %vm810, %v806
      %824 = vst.msk [vmem:[%s280 + $0x68] sm:$0xff] %vm810, %v807
      %825 = vst.msk [vmem:[%s280 + $0x70] sm:$0xff] %vm810, %v808
      %826 = vst.msk [vmem:[%s280 + $0x78] sm:$0xff] %vm810, %v809
      %s827 = smul.u32 16, %s18
      %p828 = scmp.lt.s32.totalorder %s827, 31
      %s829 = scalar_select %p828, %s827, 31
      %s830 = smul.addr %s829, 8
      %s831 = scalar_lea.vmem %s7, %s830
      // Predicated region
      $region49: #{tpu_custom_call.1} parent=47 // pred_check
        %p832 = pneg %p188
      $region50: #{tpu_custom_call.1} parent=47 // pred_check_branch
        %834 = sbr.rel (%p832) target = $region52
      $region51: #{tpu_custom_call.1} parent=47 // pred_region
        %s835 = smul.u32 16, %s18
      $region52: #{tpu_custom_call.1} parent=47 // pred_fallthru
        _
    $region48: #{tpu_custom_call.1} parent=5 // pred_fallthru
      _
    %p836 = scmp.le.s32.totalorder 2, %s13
    // Predicated region
    $region53: #{tpu_custom_call.1} parent=5 // pred_check
      %p837 = pneg %p836
    $region54: #{tpu_custom_call.1} parent=5 // pred_check_branch
      %839 = sbr.rel (%p837) target = $region56
    $region55: #{tpu_custom_call.1} parent=5 // pred_region
      %s840 = ssub.s32 %s13, 2
      // Predicated region
      $region57: #{tpu_custom_call.1} parent=55 // pred_check
        %p841 = pneg %p194
      $region58: #{tpu_custom_call.1} parent=55 // pred_check_branch
        %843 = sbr.rel (%p841) target = $region60
      $region59: #{tpu_custom_call.1} parent=55 // pred_region
        %s844 = smul.u32 16, %s19
        %p845 = scmp.lt.s32.totalorder %s844, 31
        %s846 = scalar_select %p845, %s844, 31
        %s847 = smul.addr %s846, 8
        %s848 = scalar_lea.vmem %s7, %s847
      $region60: #{tpu_custom_call.1} parent=55 // pred_fallthru
        _
    $region56: #{tpu_custom_call.1} parent=5 // pred_fallthru
      _
  $region6: #{tpu_custom_call.1} parent=0 // loop_footer
    %s17 = sadd.s32 1, %s13
  $region7: #{tpu_custom_call.1} parent=0 // loop_footer_branch
    %12 = sbr.rel target = $region3
  $region8: #{tpu_custom_call.1} parent=0 // loop_exit
    _

</llo_original>
